<compile_context>
chip_gen: v7x
topology: tpu7x:2x2x1
jax: 0.10.0
libtpu: 0.0.40
codegen_flags: <defaults>
</compile_context>

<pallas_src>
import functools

import jax
import jax.numpy as jnp
from jax.experimental import pallas as pl
from jax.experimental.pallas import tpu as pltpu

GAMMA = 2.0
EPS = 1e-07  # defined by the module but unused in its forward (kept for fidelity)

_LANES = 128           # TPU lane width
_ROW_ALIGN = 16        # sublane packing granule for bf16 (also valid for f32)
_MAX_TILE_ROWS = 4096  # keeps the (TB, 1) int32 target buffer <= 2 MiB per pipeline stage
_SPLIT_MIN_ROWS = 256  # only split a single-block grid when both halves stay this big


def _round_up(x, m):
    return (x + m - 1) // m * m


def _ce_partial_kernel(logits_ref, target_ref, out_ref, *, n_total, rows_per_block):
    """Per-grid-block partial sum of per-sample cross-entropy (lane-dense output row)."""
    i = pl.program_id(0)

    logits = logits_ref[...].astype(jnp.float32)   # (TB, C) upcast in-register; HBM stays narrow
    tgt = target_ref[...]                          # (TB, 1) int32
    tb, c = logits.shape

    # Row-validity mask: the last block may hang off the end of the batch; masked rows
    # (whatever garbage they contain) contribute exactly 0 to the partial sum.
    row_ids = i * rows_per_block + jax.lax.broadcasted_iota(jnp.int32, (tb, 1), 0)
    valid = row_ids < n_total                      # (TB, 1)

    # One fused traversal of the block: `shifted` feeds both the exp-reduce and the one-hot
    # target gather, and the per-row max cancels out of the final CE.
    m = jnp.max(logits, axis=-1, keepdims=True)                       # (TB, 1)
    shifted = logits - m                                              # (TB, C)
    sumexp = jnp.sum(jnp.exp(shifted), axis=-1, keepdims=True)        # (TB, 1)

    class_ids = jax.lax.broadcasted_iota(jnp.int32, (tb, c), 1)       # (TB, C)
    tgt_shifted = jnp.sum(jnp.where(class_ids == tgt, shifted, 0.0),
                          axis=-1, keepdims=True)                     # (TB, 1)

    # CE = (m + log(sumexp)) - (m + tgt_shifted): the row max cancels.
    ce = jnp.where(valid, jnp.log(sumexp) - tgt_shifted, 0.0)         # (TB, 1) per-sample CE
    s = jnp.sum(ce)                                                   # scalar partial sum

    # Lane-dense store: every lane of this block's output row carries the partial sum.
    out_ref[...] = jnp.full(out_ref.shape, s, dtype=out_ref.dtype)


def focal_loss(logits, targets, *, gamma=GAMMA, batch_tile=None):
    """logits: (N, C) float (f32/bf16/fp16); targets: (N,) int in [0, C). Scalar f32 loss."""
    n, c = logits.shape

    # Lane-pad tiny class counts so every lane does useful work and DMA rows are lane-dense
    # (trivially cheap at C < 128). For C >= 128 keep the full-C block (block dim == array
    # dim is legal): re-padding large logits in XLA would add a full extra HBM pass to a
    # kernel that is already HBM-bandwidth-bound.
    if c < _LANES:
        logits = jnp.pad(logits, ((0, 0), (0, _LANES - c)), constant_values=-1e30)
        c = _LANES

    itemsize = jnp.dtype(logits.dtype).itemsize
    c_lanes = _round_up(c, _LANES)                 # lanes the block actually occupies in VMEM

    # NOTE: out-of-range targets (t < 0 or t >= C) silently contribute tgt_logit = 0 here,
    # whereas torch.nn.CrossEntropyLoss would raise. Inputs are assumed valid.
    targets_2d = targets.astype(jnp.int32).reshape(n, 1)

    try:
        vmem_cap = int(pltpu.get_tpu_info().vmem_capacity_bytes)
    except Exception:                              # conservative fallback (v7x-sized VMEM)
        vmem_cap = 64 * 1024 * 1024

    auto_tile = batch_tile is None
    if auto_tile:
        # Target ~6 MiB of logits per pipeline buffer on 128 MiB parts (v5e/v6e) and ~4 MiB
        # on 64 MiB parts (v7x): on the ~85% HBM-roofline plateau, yet double-buffered it
        # leaves plenty of scoped-VMEM headroom everywhere.
        per_buf = 6 * 1024 * 1024 if vmem_cap >= 100 * 1024 * 1024 else 4 * 1024 * 1024
        rows = per_buf // (c_lanes * itemsize)
        batch_tile = min(_MAX_TILE_ROWS, rows)
    batch_tile = max(_ROW_ALIGN, (batch_tile // _ROW_ALIGN) * _ROW_ALIGN)
    padded_n = _round_up(n, _ROW_ALIGN)
    batch_tile = min(batch_tile, padded_n)         # never tile past the (16-row padded) batch

    num_blocks = (n + batch_tile - 1) // batch_tile
    if auto_tile and num_blocks == 1 and n >= 2 * _SPLIT_MIN_ROWS:
        # v7x megacore: a single-block grid leaves one TensorCore idle; split into two
        # "parallel" blocks (costs only one extra ~0.35 us grid step on 1-TC chips).
        batch_tile = max(_ROW_ALIGN, _round_up((n + 1) // 2, _ROW_ALIGN))
        num_blocks = (n + batch_tile - 1) // batch_tile

    kernel = functools.partial(_ce_partial_kernel, n_total=n, rows_per_block=batch_tile)

    # Scoped-VMEM request: double-buffered logits + (TB, 1) targets (lane-padded to 128 in
    # VMEM) + the lane-dense output rows, plus slack for Mosaic internals.
    logits_buf = batch_tile * c_lanes * itemsize
    target_buf = batch_tile * _LANES * 4
    est = 2 * (logits_buf + target_buf) + 2 * _LANES * 4 + (1 << 20)
    vmem_limit = max(24 * 1024 * 1024, est + 4 * 1024 * 1024)
    vmem_limit = int(min(vmem_limit, max(24 * 1024 * 1024, vmem_cap - 8 * 1024 * 1024)))

    partials = pl.pallas_call(
        kernel,
        out_shape=jax.ShapeDtypeStruct((num_blocks, _LANES), jnp.float32),
        grid_spec=pltpu.PrefetchScalarGridSpec(
            num_scalar_prefetch=0,
            grid=(num_blocks,),
            in_specs=[
                pl.BlockSpec((batch_tile, c), lambda i: (i, 0)),
                # TODO(synk): for tiny C a lane-dense (1, batch_tile) targets block would cut
                # this buffer/DMA ~128x, but it needs a lane->sublane relayout in-kernel; for
                # production class counts (C >> 128) the (TB, 1) layout is already negligible
                # (<1% of the logits bytes), so the known-good layout is kept.
                pl.BlockSpec((batch_tile, 1), lambda i: (i, 0)),
            ],
            out_specs=pl.BlockSpec((1, _LANES), lambda i: (i, 0)),
        ),
        compiler_params=pltpu.CompilerParams(
            dimension_semantics=("parallel",),
            vmem_limit_bytes=vmem_limit,
        ),
    )(logits, targets_2d)

    # Tiny finalize over num_blocks values: mean CE ('logp') -> focal transform.
    mean_ce = jnp.sum(partials[:, 0]) / jnp.float32(n)
    p = jnp.exp(-mean_ce)
    one_minus_p = 1.0 - p
    g = float(gamma)
    if g.is_integer() and g >= 0:
        w = jnp.float32(1.0)
        for _ in range(int(g)):                    # plain multiplies, no pow()
            w = w * one_minus_p
    else:
        w = one_minus_p ** gamma
    return w * mean_ce


def focal_loss_ref(logits, targets, gamma=GAMMA):
    """Pure-JAX reference mirroring the PyTorch module."""
    logits = logits.astype(jnp.float32)
    lse = jax.nn.logsumexp(logits, axis=-1)
    tgt_logit = jnp.take_along_axis(logits, targets[:, None], axis=-1)[:, 0]
    logp = jnp.mean(lse - tgt_logit)
    p = jnp.exp(-logp)
    return (1.0 - p) ** gamma * logp


if __name__ == "__main__":
    key = jax.random.PRNGKey(0)
    k1, k2, k3, k4, k5, k6 = jax.random.split(key, 6)

    # Case 1: small, tile-aligned batch; C < 128 exercises the lane-padding path.
    N, C = 16, 16
    logits = jax.random.normal(k1, (N, C), dtype=jnp.float32)
    targets = jax.random.randint(k2, (N,), 0, C, dtype=jnp.int32)
    out = jax.block_until_ready(focal_loss(logits, targets))
    ref = focal_loss_ref(logits, targets)
    assert jnp.allclose(out, ref, atol=1e-5, rtol=1e-5), (out, ref)

    # Case 2: batch not a multiple of the tile (exercises cdiv grid + row-validity mask).
    N2, C2 = 13, 16
    logits2 = jax.random.normal(k3, (N2, C2), dtype=jnp.float32)
    targets2 = jax.random.randint(k4, (N2,), 0, C2, dtype=jnp.int32)
    out2 = jax.block_until_ready(focal_loss(logits2, targets2))
    ref2 = focal_loss_ref(logits2, targets2)
    assert jnp.allclose(out2, ref2, atol=1e-5, rtol=1e-5), (out2, ref2)

    # Case 3: bf16 logits (recommended HBM storage dtype), C >= 128 and not a lane multiple
    # (full-C block), several grid blocks + masked tail via an explicit batch_tile.
    N3, C3 = 40, 200
    logits3 = jax.random.normal(k5, (N3, C3), dtype=jnp.float32).astype(jnp.bfloat16)
    targets3 = jax.random.randint(k6, (N3,), 0, C3, dtype=jnp.int32)
    out3 = jax.block_until_ready(focal_loss(logits3, targets3, batch_tile=16))
    ref3 = focal_loss_ref(logits3, targets3)
    assert jnp.allclose(out3, ref3, atol=1e-4, rtol=1e-4), (out3, ref3)

    print("KERNEL_OK")
</pallas_src>

<mosaic_0001>
module attributes {stable_mosaic.version = 11 : i64} {
  func.func @_ce_partial_kernel(%arg0: i32, %arg1: memref<16x128xf32, #tpu.memory_space<vmem>>, %arg2: memref<16x1xi32, #tpu.memory_space<vmem>>, %arg3: memref<1x128xf32, #tpu.memory_space<vmem>>) attributes {dimension_semantics = [#tpu.dimension_semantics<parallel>], iteration_bounds = array<i64: 1>, scalar_prefetch = 0 : i64, scratch_operands = 0 : i64, tpu.core_type = #tpu.core_type<tc>, window_params = [{transform_indices = @transform_0, window_bounds = array<i64: 16, 128>}, {transform_indices = @transform_1, window_bounds = array<i64: 16, 1>}, {transform_indices = @transform_2, window_bounds = array<i64: 1, 128>}]} {
    %c0 = arith.constant 0 : index
    %c0_0 = arith.constant 0 : index
    %0 = vector.load %arg1[%c0, %c0_0] : memref<16x128xf32, #tpu.memory_space<vmem>>, vector<16x128xf32>
    %c0_1 = arith.constant 0 : index
    %c0_2 = arith.constant 0 : index
    %1 = vector.load %arg2[%c0_1, %c0_2] : memref<16x1xi32, #tpu.memory_space<vmem>>, vector<16x1xi32>
    %c16_i32 = arith.constant 16 : i32
    %2 = arith.muli %arg0, %c16_i32 : i32
    %3 = tpu.iota {dimensions = array<i32: 0>} : vector<16x1xi32>
    %4 = vector.broadcast %2 : i32 to vector<16x1xi32>
    %5 = arith.addi %4, %3 : vector<16x1xi32>
    %c16_i32_3 = arith.constant 16 : i32
    %6 = vector.broadcast %c16_i32_3 : i32 to vector<16x1xi32>
    %7 = arith.cmpi slt, %5, %6 : vector<16x1xi32>
    %cst = arith.constant dense<0xFF800000> : vector<16xf32>
    %8 = vector.multi_reduction <maximumf>, %0, %cst [1] : vector<16x128xf32> to vector<16xf32>
    %9 = vector.shape_cast %8 : vector<16xf32> to vector<16x1xf32>
    %10 = vector.broadcast %9 : vector<16x1xf32> to vector<16x128xf32>
    %11 = arith.subf %0, %10 : vector<16x128xf32>
    %12 = math.exp %11 : vector<16x128xf32>
    %cst_4 = arith.constant dense<0.000000e+00> : vector<16xf32>
    %13 = vector.multi_reduction <add>, %12, %cst_4 [1] : vector<16x128xf32> to vector<16xf32>
    %14 = vector.shape_cast %13 : vector<16xf32> to vector<16x1xf32>
    %15 = tpu.iota {dimensions = array<i32: 1>} : vector<16x128xi32>
    %16 = vector.broadcast %1 : vector<16x1xi32> to vector<16x128xi32>
    %17 = arith.cmpi eq, %15, %16 : vector<16x128xi32>
    %cst_5 = arith.constant 0.000000e+00 : f32
    %18 = vector.broadcast %cst_5 : f32 to vector<16x128xf32>
    %19 = arith.select %17, %11, %18 : vector<16x128xi1>, vector<16x128xf32>
    %cst_6 = arith.constant dense<0.000000e+00> : vector<16xf32>
    %20 = vector.multi_reduction <add>, %19, %cst_6 [1] : vector<16x128xf32> to vector<16xf32>
    %21 = vector.shape_cast %20 : vector<16xf32> to vector<16x1xf32>
    %22 = math.log %14 : vector<16x1xf32>
    %23 = arith.subf %22, %21 : vector<16x1xf32>
    %cst_7 = arith.constant 0.000000e+00 : f32
    %24 = vector.broadcast %cst_7 : f32 to vector<16x1xf32>
    %25 = arith.select %7, %23, %24 : vector<16x1xi1>, vector<16x1xf32>
    %26 = vector.shape_cast %25 : vector<16x1xf32> to vector<1x16x1xf32>
    %cst_8 = arith.constant dense<0.000000e+00> : vector<1xf32>
    %27 = vector.multi_reduction <add>, %26, %cst_8 [1, 2] : vector<1x16x1xf32> to vector<1xf32>
    %28 = vector.shape_cast %27 : vector<1xf32> to vector<1x1x1xf32>
    %29 = vector.extract %28[0, 0, 0] : f32 from vector<1x1x1xf32>
    %30 = vector.broadcast %29 : f32 to vector<1x128xf32>
    %c0_9 = arith.constant 0 : index
    %c0_10 = arith.constant 0 : index
    %31 = vector.load %arg3[%c0_9, %c0_10] : memref<1x128xf32, #tpu.memory_space<vmem>>, vector<1x128xf32>
    tpu.vector_store %arg3[%c0_9, %c0_10], %30 {strides = array<i32>} : memref<1x128xf32, #tpu.memory_space<vmem>>, vector<1x128xf32>,
    return
  }
  func.func @transform_0(%arg0: i32) -> (i32, i32) {
    %c0_i32 = arith.constant 0 : i32
    %c0_i32_0 = arith.constant 0 : i32
    return %arg0, %c0_i32 : i32, i32
  }
  func.func @transform_1(%arg0: i32) -> (i32, i32) {
    %c0_i32 = arith.constant 0 : i32
    %c0_i32_0 = arith.constant 0 : i32
    return %arg0, %c0_i32 : i32, i32
  }
  func.func @transform_2(%arg0: i32) -> (i32, i32) {
    %c0_i32 = arith.constant 0 : i32
    %c0_i32_0 = arith.constant 0 : i32
    return %arg0, %c0_i32 : i32, i32
  }
}

</mosaic_0001>

<llo_original>
// kernel: tpu_custom_call.1
$region0: #{tpu_custom_call.1}
  #allocation0 [shape = 'u32[]', space=smem, size = 0x4, offset = 0x4, fixed_abs, tag = 'smem constant byte address 0x4 - core index']
  #allocation1 [shape = 'u32[144,128]{1,0:T(1,128)}', space=vmem, size = 0x12000, scoped, tag = 'internal scratch']
  %s0 = inlined_call_operand.vmem [shape: f32[16,128], index: 0, kind: input, shape index: {}]
  %s1 = inlined_call_operand.vmem [shape: s32[16,1], index: 1, kind: input, shape index: {}]
  %s2 = inlined_call_operand.hbm [shape: f32[1,128], index: 2, kind: output, shape index: {}]
  %s3 = sld [smem:[#allocation0]]
  $region18: #{tpu_custom_call.1} parent=0
    _
  %s5 = ssub.s32 1, %s3
  %s6 = scalar_select 0, %s5, %s3
  $region1: #{tpu_custom_call.1} parent=0
    #allocation2 [shape = 'u8[512]{0}', space=vmem, size = 0x400, scoped, tag = 'output window, operand 0, single buffered']
    #allocation3 [shape = 's32[1]{0}', space=sflag, size = 0x4, scoped, tag = 'scoped memory for tpu_custom_call.1']
    %7 = vsyncpa [#allocation3], 0
    // Predicated region
    $region2: #{tpu_custom_call.1} parent=1 // pred_check
      _
    $region3: #{tpu_custom_call.1} parent=1 // pred_check_branch
      %9 = sbr.rel (0) target = $region5
    $region4: #{tpu_custom_call.1} parent=1 // pred_region
      _
    $region5: #{tpu_custom_call.1} parent=1 // pred_fallthru
      _
    // Predicated region
    $region6: #{tpu_custom_call.1} parent=1 // pred_check
      _
    $region7: #{tpu_custom_call.1} parent=1 // pred_check_branch
      %11 = sbr.rel (0) target = $region9
    $region8: #{tpu_custom_call.1} parent=1 // pred_region
      _
    $region9: #{tpu_custom_call.1} parent=1 // pred_fallthru
      _
    %v12 = vld [vmem:[%s0] sm:$0xff]
    %v13 = vld [vmem:[%s0 + $0x8] sm:$0xff]
    %v14 = vld [vmem:[%s1] sm:$0xff]
    %v15 = vld [vmem:[%s1 + $0x8] sm:$0xff]
    %s16 = smul.u32 0, 16
    %v17 = vlaneseq
    %v18 = vshrl.u32 %v17, 7
    %v19 = vadd.s32 %v18, 8
    %v20 = vstv %s16
    %v21 = vadd.s32 %v20, %v18
    %v22 = vadd.s32 %v20, %v19
    %vm23 = vcmp.lt.s32.totalorder %v21, 16
    %vm24 = vcmp.lt.s32.totalorder %v22, 16
    %25 = vmax.xlane.f32.xlu0 %v12
    %v26 = vpop.xlane.xlu0 %25
    %27 = vmax.xlane.f32.xlu0 %v13
    %v28 = vpop.xlane.xlu0 %27
    %v29 = vsub.f32 %v12, %v26
    %v30 = vsub.f32 %v13, %v28
    %v31 = vmul.f32 %v29, 1.442695
    %v32 = vpow.pop %v31
    %v33 = vmul.f32 %v30, 1.442695
    %v34 = vpow.pop %v33
    %35 = vadd.xlane.f32.xlu0 %v32
    %v36 = vpop.xlane.xlu0 %35
    %37 = vadd.xlane.f32.xlu0 %v34
    %v38 = vpop.xlane.xlu0 %37
    %v39 = vlaneseq
    %v40 = vand.u32 %v39, 127
    %41 = vset.pattern.permute.xlu0 0
    %42 = vperm.xlu0 %41, %v14
    %v43 = vpop.permute.xlu0 %42
    %44 = vset.pattern.permute.xlu0 0
    %45 = vperm.xlu0 %44, %v15
    %v46 = vpop.permute.xlu0 %45
    %vm47 = vcmp.eq.s32.totalorder %v40, %v43
    %vm48 = vcmp.eq.s32.totalorder %v40, %v46
    %v49 = vsel %vm47, %v29, 0.0
    %v50 = vsel %vm48, %v30, 0.0
    %51 = vadd.xlane.f32.xlu0 %v49
    %v52 = vpop.xlane.xlu0 %51
    %53 = vadd.xlane.f32.xlu0 %v50
    %v54 = vpop.xlane.xlu0 %53
    %v55 = vlog2.pop %v36
    %v56 = vmul.f32 %v55, 0.6931472
    %v57 = vlog2.pop %v38
    %v58 = vmul.f32 %v57, 0.6931472
    %v59 = vsub.f32 %v56, %v52
    %v60 = vsub.f32 %v58, %v54
    %v61 = vsel %vm23, %v59, 0.0
    %v62 = vsel %vm24, %v60, 0.0
    %vm63 = vcmask 7168
    %v64 = vsel %vm63, %v61, 0.0
    %v65 = vsel %vm63, %v62, 0.0
    %v66 = vadd.f32 %v64, %v65
    %67 = vadd.xlane.f32.xlu0 %v66
    %v68 = vpop.xlane.xlu0 %67
    %v69 = vrot.slane %v68, 4
    %v70 = vadd.f32 %v68, %v69
    %v71 = vrot.slane %v70, 2
    %v72 = vadd.f32 %v70, %v71
    %v73 = vrot.slane %v72, 1
    %v74 = vadd.f32 %v72, %v73
    %s75 = vtos %v74
    %v76 = vstv %s75
    %77 = vst [vmem:[#allocation2] sm:$0x1] %v76
    // Predicated region
    $region10: #{tpu_custom_call.1} parent=1 // pred_check
      _
    $region11: #{tpu_custom_call.1} parent=1 // pred_check_branch
      %79 = sbr.rel (0) target = $region13
    $region12: #{tpu_custom_call.1} parent=1 // pred_region
      %s81 = ssub.s32 16, 16
      %82 = vsyncadd [#allocation3], %s81
      %s84 = sshll.u32 [#allocation2], 4
      %s85 = int_to_ptr.vmem [resolvable:$true] %s84
      %87 = dma.vmem_to_hbm [thread:$0]  %s85, 16, %s2, [#allocation3]
    $region13: #{tpu_custom_call.1} parent=1 // pred_fallthru
      _
    // Predicated region
    $region14: #{tpu_custom_call.1} parent=1 // pred_check
      _
    $region15: #{tpu_custom_call.1} parent=1 // pred_check_branch
      %89 = sbr.rel (0) target = $region17
    $region16: #{tpu_custom_call.1} parent=1 // pred_region
      %90 = dma.done [#allocation3], 16
    $region17: #{tpu_custom_call.1} parent=1 // pred_fallthru
      _
    %91 = vsyncpa [#allocation3], 1

</llo_original>
